<compile_context>
chip_gen: v7x
topology: tpu7x:2x2x1
jax: 0.10.0
libtpu: 0.0.40
codegen_flags: <defaults>
</compile_context>

<pallas_src>
import jax
import jax.numpy as jnp
from jax.experimental import pallas as pl
from jax.experimental.pallas import tpu as pltpu


def transition_kernel(x_ref, w1_ref, b1_ref, w2d_ref, b2d_ref, out_ref):
    # fc1 + ReLU (accumulate in f32 regardless of operand dtype)
    h = jnp.dot(x_ref[...], w1_ref[...], preferred_element_type=jnp.float32)
    h = jnp.maximum(h + b1_ref[...], 0.0)

    # fc2 on the precomputed *difference* weights: d = y_even - y_odd
    d = jnp.dot(h.astype(w2d_ref.dtype), w2d_ref[...],
                preferred_element_type=jnp.float32) + b2d_ref[...]

    # 2-way softmax over each (even, odd) pair == sigmoid of the logit difference
    pe = 1.0 / (1.0 + jnp.exp(-d))        # exp on the EUP; stable (overflow -> pe = 0)
    half = pe.shape[-1]
    out_ref[:, :half] = pe.astype(out_ref.dtype)
    out_ref[:, half:] = (1.0 - pe).astype(out_ref.dtype)


def _round_up(a, m):
    return ((a + m - 1) // m) * m


def transition_nn_forward(x, w1, b1, w2, b2, *, tile_b=512, use_bf16=False):
    B, in_dim = x.shape
    hidden_dim = w1.shape[1]
    out_dim = w2.shape[1]
    assert out_dim % 2 == 0, "softmax pairs require even output_dim"
    assert (B * out_dim) % 4 == 0, "view(-1, 2, 2) requires B*output_dim % 4 == 0"
    half = out_dim // 2

    # Host-side, one-time layout plumbing: difference weights for the pair softmax.
    w2d = w2[:, 0::2] - w2[:, 1::2]                   # (hidden, half)
    b2d = (b2[0::2] - b2[1::2]).reshape(1, half)      # (1, half), keep f32
    b1_2d = b1.reshape(1, hidden_dim)                 # (1, hidden), keep f32

    if use_bf16:
        # Halves the dominant HBM streams and runs the MXU bf16-native (v6e/v7x).
        # Tolerance vs the f32 reference relaxes to ~1e-2.
        x = x.astype(jnp.bfloat16)
        w1 = w1.astype(jnp.bfloat16)
        w2d = w2d.astype(jnp.bfloat16)

    # Batch tile: biggest tile up to tile_b, but keep >= 2 grid steps when B allows it
    # so the DMA pipeline runs and v7x's two TensorCores both get work.
    if B <= 8:
        TB = B                                         # block == full dim (always legal)
    else:
        TB = min(tile_b, max(8, _round_up(pl.cdiv(B, 2), 8)))
    n_tiles = pl.cdiv(B, TB)                           # ragged last block handled by Pallas

    # Explicit VMEM budget: resident weights + double-buffered x/out streams + live
    # intermediates (h, d, pe), capped at 7/8 of physical VMEM for compiler headroom.
    xb = jnp.dtype(x.dtype).itemsize
    wb = jnp.dtype(w1.dtype).itemsize
    weights_bytes = wb * (in_dim * hidden_dim + hidden_dim * half) + 4 * (hidden_dim + half)
    stream_bytes = 2 * (xb * TB * in_dim + 4 * TB * out_dim)      # 2x for double buffering
    interm_bytes = 4 * TB * (hidden_dim + 2 * half)               # h + d/pe temporaries
    try:
        phys_vmem = int(pltpu.get_tpu_info().vmem_capacity_bytes)
    except Exception:
        phys_vmem = 64 * 1024 * 1024                              # conservative (v7x per-TC)
    cap = (phys_vmem * 7) // 8
    vmem_limit = int(min(cap, max(8 * 1024 * 1024,
                                  weights_bytes + stream_bytes + 2 * interm_bytes)))

    out = pl.pallas_call(
        transition_kernel,
        out_shape=jax.ShapeDtypeStruct((B, out_dim), jnp.float32),
        grid=(n_tiles,),
        in_specs=[
            # x streams per batch tile.  If profiling shows exposed x DMA, add
            # pipeline_mode=pl.Buffered(3) here (and add a third buffer to the budget).
            pl.BlockSpec((TB, in_dim), lambda i: (i, 0)),
            # weights / biases: same block every step -> VMEM-resident across the grid.
            pl.BlockSpec((in_dim, hidden_dim), lambda i: (0, 0)),
            pl.BlockSpec((1, hidden_dim), lambda i: (0, 0)),
            pl.BlockSpec((hidden_dim, half), lambda i: (0, 0)),
            pl.BlockSpec((1, half), lambda i: (0, 0)),
        ],
        out_specs=pl.BlockSpec((TB, out_dim), lambda i: (i, 0)),
        compiler_params=pltpu.CompilerParams(
            dimension_semantics=("parallel",),   # shards batch tiles across v7x's 2 TCs
            vmem_limit_bytes=vmem_limit,
        ),
    )(x, w1, b1_2d, w2d, b2d)

    # Glue (single pass over the thin output): re-interleave pair columns and apply
    # the view(-1, 2, 2) regrouping.  po was already formed in-kernel.
    pe, po = out[:, :half], out[:, half:]
    return jnp.stack([pe, po], axis=-1).reshape(-1, 2, 2)


def reference_forward(x, w1, b1, w2, b2):
    h = jnp.maximum(x @ w1 + b1, 0.0)
    y = (h @ w2 + b2).reshape(-1, 2, 2)
    return jax.nn.softmax(y, axis=-1)


if __name__ == "__main__":
    # small shapes consistent with the module's forward
    batch, input_dim, hidden_dim, output_dim = 8, 16, 32, 4

    key = jax.random.PRNGKey(0)
    k1, k2, k3, k4, kx = jax.random.split(key, 5)

    # deterministic PyTorch-Linear-style init: U(-1/sqrt(fan_in), 1/sqrt(fan_in))
    lim1 = 1.0 / jnp.sqrt(jnp.float32(input_dim))
    lim2 = 1.0 / jnp.sqrt(jnp.float32(hidden_dim))
    w1 = jax.random.uniform(k1, (input_dim, hidden_dim), jnp.float32, -lim1, lim1)
    b1 = jax.random.uniform(k2, (hidden_dim,), jnp.float32, -lim1, lim1)
    w2 = jax.random.uniform(k3, (hidden_dim, output_dim), jnp.float32, -lim2, lim2)
    b2 = jax.random.uniform(k4, (output_dim,), jnp.float32, -lim2, lim2)

    x = jax.random.normal(kx, (batch, input_dim), jnp.float32)

    out = jax.block_until_ready(transition_nn_forward(x, w1, b1, w2, b2))

    ref = reference_forward(x, w1, b1, w2, b2)
    assert out.shape == (batch * output_dim // 4, 2, 2)
    assert jnp.allclose(out, ref, atol=1e-5, rtol=1e-5), "mismatch vs reference"

    print("KERNEL_OK")
</pallas_src>

<mosaic_0001>
module attributes {stable_mosaic.version = 11 : i64} {
  func.func @transition_kernel(%arg0: i32, %arg1: memref<8x16xf32, #tpu.memory_space<vmem>>, %arg2: memref<16x32xf32, #tpu.memory_space<vmem>>, %arg3: memref<1x32xf32, #tpu.memory_space<vmem>>, %arg4: memref<32x2xf32, #tpu.memory_space<vmem>>, %arg5: memref<1x2xf32, #tpu.memory_space<vmem>>, %arg6: memref<8x4xf32, #tpu.memory_space<vmem>>) attributes {dimension_semantics = [#tpu.dimension_semantics<parallel>], iteration_bounds = array<i64: 1>, scalar_prefetch = 0 : i64, scratch_operands = 0 : i64, tpu.core_type = #tpu.core_type<tc>, window_params = [{transform_indices = @transform_0, window_bounds = array<i64: 8, 16>}, {pipeline_mode = #tpu.pipeline_mode<synchronous>, transform_indices = @transform_1, window_bounds = array<i64: 16, 32>}, {pipeline_mode = #tpu.pipeline_mode<synchronous>, transform_indices = @transform_2, window_bounds = array<i64: 1, 32>}, {pipeline_mode = #tpu.pipeline_mode<synchronous>, transform_indices = @transform_3, window_bounds = array<i64: 32, 2>}, {pipeline_mode = #tpu.pipeline_mode<synchronous>, transform_indices = @transform_4, window_bounds = array<i64: 1, 2>}, {transform_indices = @transform_5, window_bounds = array<i64: 8, 4>}]} {
    %c0 = arith.constant 0 : index
    %c0_0 = arith.constant 0 : index
    %0 = vector.load %arg1[%c0, %c0_0] : memref<8x16xf32, #tpu.memory_space<vmem>>, vector<8x16xf32>
    %c0_1 = arith.constant 0 : index
    %c0_2 = arith.constant 0 : index
    %1 = vector.load %arg2[%c0_1, %c0_2] : memref<16x32xf32, #tpu.memory_space<vmem>>, vector<16x32xf32>
    %cst = arith.constant dense<0.000000e+00> : vector<8x32xf32>
    %2 = tpu.matmul %0, %1, %cst {dimension_numbers = #tpu.dot_dimension_numbers<[1], [0], [0], [1], [0, 0, 1, 1], [], []>} : vector<8x16xf32>, vector<16x32xf32>, vector<8x32xf32> -> vector<8x32xf32>
    %c0_3 = arith.constant 0 : index
    %c0_4 = arith.constant 0 : index
    %3 = vector.load %arg3[%c0_3, %c0_4] : memref<1x32xf32, #tpu.memory_space<vmem>>, vector<1x32xf32>
    %4 = vector.broadcast %3 : vector<1x32xf32> to vector<8x32xf32>
    %5 = arith.addf %2, %4 : vector<8x32xf32>
    %cst_5 = arith.constant 0.000000e+00 : f32
    %6 = vector.broadcast %cst_5 : f32 to vector<8x32xf32>
    %7 = arith.maximumf %5, %6 : vector<8x32xf32>
    %c0_6 = arith.constant 0 : index
    %c0_7 = arith.constant 0 : index
    %8 = vector.load %arg4[%c0_6, %c0_7] : memref<32x2xf32, #tpu.memory_space<vmem>>, vector<32x2xf32>
    %cst_8 = arith.constant dense<0.000000e+00> : vector<8x2xf32>
    %9 = tpu.matmul %7, %8, %cst_8 {dimension_numbers = #tpu.dot_dimension_numbers<[1], [0], [0], [1], [0, 0, 1, 1], [], []>} : vector<8x32xf32>, vector<32x2xf32>, vector<8x2xf32> -> vector<8x2xf32>
    %c0_9 = arith.constant 0 : index
    %c0_10 = arith.constant 0 : index
    %10 = vector.load %arg5[%c0_9, %c0_10] : memref<1x2xf32, #tpu.memory_space<vmem>>, vector<1x2xf32>
    %11 = vector.broadcast %10 : vector<1x2xf32> to vector<8x2xf32>
    %12 = arith.addf %9, %11 : vector<8x2xf32>
    %cst_11 = arith.constant 0.000000e+00 : f32
    %13 = vector.broadcast %cst_11 : f32 to vector<8x2xf32>
    %14 = arith.subf %13, %12 : vector<8x2xf32>
    %15 = math.exp %14 : vector<8x2xf32>
    %cst_12 = arith.constant 1.000000e+00 : f32
    %16 = vector.broadcast %cst_12 : f32 to vector<8x2xf32>
    %17 = arith.addf %16, %15 : vector<8x2xf32>
    %cst_13 = arith.constant 1.000000e+00 : f32
    %18 = vector.broadcast %cst_13 : f32 to vector<8x2xf32>
    %19 = arith.divf %18, %17 : vector<8x2xf32>
    %c0_14 = arith.constant 0 : index
    %c0_15 = arith.constant 0 : index
    %20 = vector.load %arg6[%c0_14, %c0_15] : memref<8x4xf32, #tpu.memory_space<vmem>>, vector<8x2xf32>
    tpu.vector_store %arg6[%c0_14, %c0_15], %19 {strides = array<i32>} : memref<8x4xf32, #tpu.memory_space<vmem>>, vector<8x2xf32>,
    %cst_16 = arith.constant 1.000000e+00 : f32
    %21 = vector.broadcast %cst_16 : f32 to vector<8x2xf32>
    %22 = arith.subf %21, %19 : vector<8x2xf32>
    %c0_17 = arith.constant 0 : index
    %c2 = arith.constant 2 : index
    %23 = vector.load %arg6[%c0_17, %c2] : memref<8x4xf32, #tpu.memory_space<vmem>>, vector<8x2xf32>
    tpu.vector_store %arg6[%c0_17, %c2], %22 {strides = array<i32>} : memref<8x4xf32, #tpu.memory_space<vmem>>, vector<8x2xf32>,
    return
  }
  func.func @transform_0(%arg0: i32) -> (i32, i32) {
    %c0_i32 = arith.constant 0 : i32
    %c0_i32_0 = arith.constant 0 : i32
    return %arg0, %c0_i32 : i32, i32
  }
  func.func @transform_1(%arg0: i32) -> (i32, i32) {
    %c0_i32 = arith.constant 0 : i32
    %c0_i32_0 = arith.constant 0 : i32
    %c0_i32_1 = arith.constant 0 : i32
    return %c0_i32, %c0_i32_0 : i32, i32
  }
  func.func @transform_2(%arg0: i32) -> (i32, i32) {
    %c0_i32 = arith.constant 0 : i32
    %c0_i32_0 = arith.constant 0 : i32
    %c0_i32_1 = arith.constant 0 : i32
    return %c0_i32, %c0_i32_0 : i32, i32
  }
  func.func @transform_3(%arg0: i32) -> (i32, i32) {
    %c0_i32 = arith.constant 0 : i32
    %c0_i32_0 = arith.constant 0 : i32
    %c0_i32_1 = arith.constant 0 : i32
    return %c0_i32, %c0_i32_0 : i32, i32
  }
  func.func @transform_4(%arg0: i32) -> (i32, i32) {
    %c0_i32 = arith.constant 0 : i32
    %c0_i32_0 = arith.constant 0 : i32
    %c0_i32_1 = arith.constant 0 : i32
    return %c0_i32, %c0_i32_0 : i32, i32
  }
  func.func @transform_5(%arg0: i32) -> (i32, i32) {
    %c0_i32 = arith.constant 0 : i32
    %c0_i32_0 = arith.constant 0 : i32
    return %arg0, %c0_i32 : i32, i32
  }
}

</mosaic_0001>

<llo_original>
// kernel: tpu_custom_call.1
$region0: #{tpu_custom_call.1}
  #allocation0 [shape = 'u32[]', space=smem, size = 0x4, offset = 0x4, fixed_abs, tag = 'smem constant byte address 0x4 - core index']
  #allocation1 [shape = 'u32[144,128]{1,0:T(1,128)}', space=vmem, size = 0x12000, scoped, tag = 'internal scratch']
  %s0 = inlined_call_operand.vmem [shape: f32[8,16], index: 0, kind: input, shape index: {}]
  %s1 = inlined_call_operand.vmem [shape: f32[16,32], index: 1, kind: input, shape index: {}]
  %s2 = inlined_call_operand.vmem [shape: f32[1,32], index: 2, kind: input, shape index: {}]
  %s3 = inlined_call_operand.vmem [shape: f32[32,2], index: 3, kind: input, shape index: {}]
  %s4 = inlined_call_operand.vmem [shape: f32[1,2], index: 4, kind: input, shape index: {}]
  %s5 = inlined_call_operand.vmem [shape: f32[8,4], index: 5, kind: output, shape index: {}]
  %s6 = sld [smem:[#allocation0]]
  $region30: #{tpu_custom_call.1} parent=0
    _
  %s8 = ssub.s32 1, %s6
  %s9 = scalar_select 0, %s8, %s6
  // Predicated region
  $region2: #{tpu_custom_call.1} parent=0 // pred_check
    _
  $region3: #{tpu_custom_call.1} parent=0 // pred_check_branch
    %11 = sbr.rel (0) target = $region5
  $region4: #{tpu_custom_call.1} parent=0 // pred_region
    _
  $region5: #{tpu_custom_call.1} parent=0 // pred_fallthru
    _
  // Predicated region
  $region6: #{tpu_custom_call.1} parent=0 // pred_check
    _
  $region7: #{tpu_custom_call.1} parent=0 // pred_check_branch
    %13 = sbr.rel (0) target = $region9
  $region8: #{tpu_custom_call.1} parent=0 // pred_region
    _
  $region9: #{tpu_custom_call.1} parent=0 // pred_fallthru
    _
  // Predicated region
  $region10: #{tpu_custom_call.1} parent=0 // pred_check
    _
  $region11: #{tpu_custom_call.1} parent=0 // pred_check_branch
    %15 = sbr.rel (0) target = $region13
  $region12: #{tpu_custom_call.1} parent=0 // pred_region
    _
  $region13: #{tpu_custom_call.1} parent=0 // pred_fallthru
    _
  // Predicated region
  $region14: #{tpu_custom_call.1} parent=0 // pred_check
    _
  $region15: #{tpu_custom_call.1} parent=0 // pred_check_branch
    %17 = sbr.rel (0) target = $region17
  $region16: #{tpu_custom_call.1} parent=0 // pred_region
    _
  $region17: #{tpu_custom_call.1} parent=0 // pred_fallthru
    _
  // Predicated region
  $region18: #{tpu_custom_call.1} parent=0 // pred_check
    _
  $region19: #{tpu_custom_call.1} parent=0 // pred_check_branch
    %19 = sbr.rel (0) target = $region21
  $region20: #{tpu_custom_call.1} parent=0 // pred_region
    _
  $region21: #{tpu_custom_call.1} parent=0 // pred_fallthru
    _
  %v20 = vld [vmem:[%s0] sm:$0xff]
  %v21 = vld [vmem:[%s1] sm:$0xff]
  %v22 = vld [vmem:[%s1 + $0x8] sm:$0xff]
  %v23 = vld [vmem:[%s2] sm:$0x1]
  %v25 = vlaneseq
  %v26 = vshrl.u32 %v25, 7
  %v27 = vsub.s32 0, %v26
  %v28 = vrot.slane %v23, %v27
  %vm30 = vcmask 130048
  %v32 = vsel %vm30, %v20, 0
  %34 = vmatprep.subr.mxu0 0.0
  %35 = vmatpush1.msra.mxu0 %v21
  %36 = vmatprep.subr.mxu0 0.0
  %37 = vmatpush1.msra.mxu0 %v22
  %38 = vmatprep.subr.mxu0 0.0
  %39 = vmatpush1.msra.mxu0 0.0
  %40 = vmatprep.subr.mxu0 0.0
  %41 = vmatpush1.msra.mxu0 0.0
  %42 = vmatprep.subr.mxu0 0.0
  %43 = vmatpush1.msra.mxu0 0.0
  %44 = vmatprep.subr.mxu0 0.0
  %45 = vmatpush1.msra.mxu0 0.0
  %46 = vmatprep.subr.mxu0 0.0
  %47 = vmatpush1.msra.mxu0 0.0
  %48 = vmatprep.subr.mxu0 0.0
  %49 = vmatpush1.msra.mxu0 0.0
  %50 = vmatprep.subr.mxu0 0.0
  %51 = vmatpush1.msra.mxu0 0.0
  %52 = vmatprep.subr.mxu0 0.0
  %53 = vmatpush1.msra.mxu0 0.0
  %54 = vmatprep.subr.mxu0 0.0
  %55 = vmatpush1.msra.mxu0 0.0
  %56 = vmatprep.subr.mxu0 0.0
  %57 = vmatpush1.msra.mxu0 0.0
  %58 = vmatprep.subr.mxu0 0.0
  %59 = vmatpush1.msra.mxu0 0.0
  %60 = vmatprep.subr.mxu0 0.0
  %61 = vmatpush1.msra.mxu0 0.0
  %62 = vmatprep.subr.mxu0 0.0
  %63 = vmatpush1.msra.mxu0 0.0
  %64 = vmatprep.subr.mxu0 0.0
  %65 = vmatpush1.msra.mxu0 0.0
  %66 = vmatprep.subr.mxu0 0.0
  %67 = vmatpush1.msra.mxu0 0.0
  %68 = vmatprep.subr.mxu0 0.0
  %69 = vmatpush1.msra.mxu0 0.0
  %70 = vmatprep.subr.mxu0 0.0
  %71 = vmatpush1.msra.mxu0 0.0
  %72 = vmatprep.subr.mxu0 0.0
  %73 = vmatpush1.msra.mxu0 0.0
  %74 = vmatprep.subr.mxu0 0.0
  %75 = vmatpush1.msra.mxu0 0.0
  %76 = vmatprep.subr.mxu0 0.0
  %77 = vmatpush1.msra.mxu0 0.0
  %78 = vmatprep.subr.mxu0 0.0
  %79 = vmatpush1.msra.mxu0 0.0
  %80 = vmatprep.subr.mxu0 0.0
  %81 = vmatpush1.msra.mxu0 0.0
  %82 = vmatprep.subr.mxu0 0.0
  %83 = vmatpush1.msra.mxu0 0.0
  %84 = vmatprep.subr.mxu0 0.0
  %85 = vmatpush1.msra.mxu0 0.0
  %86 = vmatprep.subr.mxu0 0.0
  %87 = vmatpush1.msra.mxu0 0.0
  %88 = vmatprep.subr.mxu0 0.0
  %89 = vmatpush1.msra.mxu0 0.0
  %90 = vmatprep.subr.mxu0 0.0
  %91 = vmatpush1.msra.mxu0 0.0
  %92 = vmatprep.subr.mxu0 0.0
  %93 = vmatpush1.msra.mxu0 0.0
  %94 = vmatprep.subr.mxu0 0.0
  %95 = vmatpush1.msra.mxu0 0.0
  %96 = vmatprep.subr.mxu0 0.0
  %97 = vmatpush1.msra.mxu0 0.0
  %98 = vmatprep.mubr.f32.mxu0 0.0
  %99 = vmatmul.mubr.f32.gmra.mrb[0].mxu0 %v32
  %v100 = vpop.f32.mrb[0].mxu0
  %v101 = vadd.f32 %v28, %v100
  %v102 = vpop.f32.mrb[0].mxu0
  %103 = vdwg.mxu0
  %v104 = vmax.f32 %v101, 0.0
  %v105 = vld [vmem:[%s3] sm:$0xff]
  %v106 = vld [vmem:[%s3 + $0x8] sm:$0xff]
  %v107 = vld [vmem:[%s3 + $0x10] sm:$0xff]
  %v108 = vld [vmem:[%s3 + $0x18] sm:$0xff]
  %v109 = vld [vmem:[%s4] sm:$0x1]
  %v111 = vlaneseq
  %v112 = vshrl.u32 %v111, 7
  %v113 = vsub.s32 0, %v112
  %v114 = vrot.slane %v109, %v113
  %vm116 = vcmask 261120
  %v118 = vsel %vm116, %v104, 0
  %120 = vmatprep.subr.mxu0 0.0
  %121 = vmatpush1.msra.mxu0 %v105
  %122 = vmatprep.subr.mxu0 0.0
  %123 = vmatpush1.msra.mxu0 %v106
  %124 = vmatprep.subr.mxu0 0.0
  %125 = vmatpush1.msra.mxu0 %v107
  %126 = vmatprep.subr.mxu0 0.0
  %127 = vmatpush1.msra.mxu0 %v108
  %128 = vmatprep.subr.mxu0 0.0
  %129 = vmatpush1.msra.mxu0 0.0
  %130 = vmatprep.subr.mxu0 0.0
  %131 = vmatpush1.msra.mxu0 0.0
  %132 = vmatprep.subr.mxu0 0.0
  %133 = vmatpush1.msra.mxu0 0.0
  %134 = vmatprep.subr.mxu0 0.0
  %135 = vmatpush1.msra.mxu0 0.0
  %136 = vmatprep.subr.mxu0 0.0
  %137 = vmatpush1.msra.mxu0 0.0
  %138 = vmatprep.subr.mxu0 0.0
  %139 = vmatpush1.msra.mxu0 0.0
  %140 = vmatprep.subr.mxu0 0.0
  %141 = vmatpush1.msra.mxu0 0.0
  %142 = vmatprep.subr.mxu0 0.0
  %143 = vmatpush1.msra.mxu0 0.0
  %144 = vmatprep.subr.mxu0 0.0
  %145 = vmatpush1.msra.mxu0 0.0
  %146 = vmatprep.subr.mxu0 0.0
  %147 = vmatpush1.msra.mxu0 0.0
  %148 = vmatprep.subr.mxu0 0.0
  %149 = vmatpush1.msra.mxu0 0.0
  %150 = vmatprep.subr.mxu0 0.0
  %151 = vmatpush1.msra.mxu0 0.0
  %152 = vmatprep.subr.mxu0 0.0
  %153 = vmatpush1.msra.mxu0 0.0
  %154 = vmatprep.subr.mxu0 0.0
  %155 = vmatpush1.msra.mxu0 0.0
  %156 = vmatprep.subr.mxu0 0.0
  %157 = vmatpush1.msra.mxu0 0.0
  %158 = vmatprep.subr.mxu0 0.0
  %159 = vmatpush1.msra.mxu0 0.0
  %160 = vmatprep.subr.mxu0 0.0
  %161 = vmatpush1.msra.mxu0 0.0
  %162 = vmatprep.subr.mxu0 0.0
  %163 = vmatpush1.msra.mxu0 0.0
  %164 = vmatprep.subr.mxu0 0.0
  %165 = vmatpush1.msra.mxu0 0.0
  %166 = vmatprep.subr.mxu0 0.0
  %167 = vmatpush1.msra.mxu0 0.0
  %168 = vmatprep.subr.mxu0 0.0
  %169 = vmatpush1.msra.mxu0 0.0
  %170 = vmatprep.subr.mxu0 0.0
  %171 = vmatpush1.msra.mxu0 0.0
  %172 = vmatprep.subr.mxu0 0.0
  %173 = vmatpush1.msra.mxu0 0.0
  %174 = vmatprep.subr.mxu0 0.0
  %175 = vmatpush1.msra.mxu0 0.0
  %176 = vmatprep.subr.mxu0 0.0
  %177 = vmatpush1.msra.mxu0 0.0
  %178 = vmatprep.subr.mxu0 0.0
  %179 = vmatpush1.msra.mxu0 0.0
  %180 = vmatprep.subr.mxu0 0.0
  %181 = vmatpush1.msra.mxu0 0.0
  %182 = vmatprep.subr.mxu0 0.0
  %183 = vmatpush1.msra.mxu0 0.0
  %184 = vmatprep.mubr.f32.mxu0 0.0
  %185 = vmatmul.mubr.f32.gmra.mrb[0].mxu0 %v118
  %v186 = vpop.f32.mrb[0].mxu0
  %v187 = vadd.f32 %v114, %v186
  %v188 = vpop.f32.mrb[0].mxu0
  %189 = vdwg.mxu0
  %v190 = vsub.f32 0.0, %v187
  %v191 = vmul.f32 %v190, 1.442695
  %v192 = vpow.pop %v191
  %v193 = vadd.f32 %v192, 1.0
  %v194 = vrcp.pop %v193
  %v195 = vmul.f32 1.0, %v194
  %vm196 = vcmask 15360
  %197 = vst.msk [vmem:[%s5] sm:$0xff] %vm196, %v195
  %v198 = vsub.f32 1.0, %v195
  %200 = vrot.lane.b32.xlu0 %v198, 2
  %v201 = vpop.permute.xlu0 %200
  %vm203 = vcmask 31760
  %204 = vst.msk [vmem:[%s5] sm:$0xff] %vm203, %v201
  // Predicated region
  $region22: #{tpu_custom_call.1} parent=0 // pred_check
    _
  $region23: #{tpu_custom_call.1} parent=0 // pred_check_branch
    %206 = sbr.rel (0) target = $region25
  $region24: #{tpu_custom_call.1} parent=0 // pred_region
    _
  $region25: #{tpu_custom_call.1} parent=0 // pred_fallthru
    _
  // Predicated region
  $region26: #{tpu_custom_call.1} parent=0 // pred_check
    _
  $region27: #{tpu_custom_call.1} parent=0 // pred_check_branch
    %208 = sbr.rel (0) target = $region29
  $region28: #{tpu_custom_call.1} parent=0 // pred_region
    _
  $region29: #{tpu_custom_call.1} parent=0 // pred_fallthru
    _

</llo_original>
